<compile_context>
chip_gen: v7x
topology: tpu7x:2x2x1
jax: 0.10.0
libtpu: 0.0.40
codegen_flags: <defaults>
</compile_context>

<pallas_src>
import jax
import jax.numpy as jnp
from jax import lax
from jax.experimental import pallas as pl

# ---- config consistent with the torch module (ModelArgs) ----
B = 2            # batch
L = 8            # sequence length
DIM = 32         # model dim
N_HEADS = 4
N_KV_HEADS = 2
HEAD_DIM = 4     # see note above
HIDDEN = 64
NORM_EPS = 1e-5
ROPE_THETA = 10000.0
REPEATS = N_HEADS // N_KV_HEADS
SCALE = HEAD_DIM ** -0.5

QW = N_HEADS * HEAD_DIM        # 16
KVW = N_KV_HEADS * HEAD_DIM    # 8
R = B * L                      # 16 rows: batch folded into sublanes
HR = N_HEADS * R               # 64 "block" key/value rows
PROJ_W = 5 * QW                # [q | k_rep | v_rep | q_swap | k_rep_swap] = 80 lanes
WDIM_W = 2 * HIDDEN + PROJ_W   # 208 lanes: [w1|w3 | fused qkv]
OUT_PAD = 128                  # lane-dense output slab width

# constants-slab lane offsets (none of these slices crosses a 128-lane tile)
C_BIAS = 0
C_ANW = HR                     # 64
C_FNW = HR + DIM               # 96
C_A = HR + 2 * DIM             # 128
C_B = HR + 2 * DIM + QW        # 144
CONST_W = HR + 2 * DIM + 2 * QW  # 160


# ----------------------------- Pallas kernel -------------------------------
def _rmsnorm(x, w, eps):
    ms = jnp.mean(x * x, axis=-1, keepdims=True)
    return w * (x * lax.rsqrt(ms + eps))


def transformer_block_kernel(x_ref, wdim_ref, wout_ref, consts_ref, vmask_ref,
                             out_ref):
    x = x_ref[...]                                            # (R, DIM) f32

    bias = consts_ref[:, C_BIAS:C_BIAS + HR]                  # (R, HR) additive batch mask
    anw = consts_ref[:, C_ANW:C_ANW + DIM]                    # (R, DIM) attn-norm weight (pre-broadcast)
    fnw = consts_ref[:, C_FNW:C_FNW + DIM]                    # (R, DIM) ffn-norm weight
    a = consts_ref[:, C_A:C_A + QW]                           # (R, QW) rope cos table
    b = consts_ref[:, C_B:C_B + QW]                           # (R, QW) rope sin table
    vmask = vmask_ref[...]                                    # (HR, QW) 0/1 head-block mask

    # ---- attention_norm (f32 VPU math) ----
    xn = _rmsnorm(x, anw, NORM_EPS)

    # ---- fused q|k|v projection: one bf16 MXU matmul, 80 lanes wide ----
    wqkv = wdim_ref[:, 2 * HIDDEN:]                           # (DIM, 80) bf16
    proj = jnp.dot(xn.astype(jnp.bfloat16), wqkv,
                   preferred_element_type=jnp.float32)        # (R, 80)
    q = proj[:, 0 * QW:1 * QW]          # already scaled by head_dim**-0.5
    k = proj[:, 1 * QW:2 * QW]          # GQA-repeated k
    v = proj[:, 2 * QW:3 * QW]          # GQA-repeated v
    q_sw = proj[:, 3 * QW:4 * QW]       # q with adjacent lanes pair-swapped
    k_sw = proj[:, 4 * QW:5 * QW]       # k with adjacent lanes pair-swapped

    # ---- RoPE (traditional, offset 0): pure VPU, no permutation matmuls ----
    q = q * a + q_sw * b
    k = k * a + k_sw * b

    # ---- block-diagonal, lane-dense attention (2 MXU matmuls total) ----
    # Row-block layout: block row j = h*R + r holds key/value row r, zeroed
    # outside head h's lane segment.
    k_blk = (jnp.concatenate([k] * N_HEADS, axis=0) * vmask).astype(jnp.bfloat16)  # (HR, QW)
    v_blk = jnp.concatenate([v] * N_HEADS, axis=0) * vmask                         # (HR, QW)

    # scores: s[q_row, h*R + k_row] = <q[q_row, head h], k[k_row, head h]>
    s = lax.dot_general(q.astype(jnp.bfloat16), k_blk,
                        dimension_numbers=(((1,), (1,)), ((), ())),
                        preferred_element_type=jnp.float32)   # (R, HR)
    s = s + bias                                              # mask cross-batch keys
    s = s - jnp.max(s, axis=-1, keepdims=True)                # global row max: segment-invariant
    e = jnp.exp(s)                                            # masked entries -> exactly 0

    # one matmul produces both the unnormalized weighted values and the
    # per-(row, head) softmax denominators (broadcast over the head's lanes).
    rhs = jnp.concatenate([v_blk, vmask], axis=-1).astype(jnp.bfloat16)  # (HR, 2*QW)
    uv = jnp.dot(e.astype(jnp.bfloat16), rhs,
                 preferred_element_type=jnp.float32)          # (R, 2*QW)
    attn = uv[:, :QW] * pl.reciprocal(uv[:, QW:], approx=True)  # (R, QW), head-concatenated

    wo = wout_ref[:QW, :]                                     # (QW, DIM) bf16
    r = jnp.dot(attn.astype(jnp.bfloat16), wo,
                preferred_element_type=jnp.float32)           # (R, DIM)
    h_res = x + r

    # ---- ffn_norm + SwiGLU (w1|w3 fused, 128-lane-dense matmul) ----
    hn = _rmsnorm(h_res, fnw, NORM_EPS)
    w13 = wdim_ref[:, :2 * HIDDEN]                            # (DIM, 128) bf16
    gu = jnp.dot(hn.astype(jnp.bfloat16), w13,
                 preferred_element_type=jnp.float32)          # (R, 2*HIDDEN)
    g = gu[:, :HIDDEN]
    u = gu[:, HIDDEN:]
    silu_g = g * pl.reciprocal(1.0 + jnp.exp(-g), approx=True)
    w2 = wout_ref[QW:, :]                                     # (HIDDEN, DIM) bf16
    ff = jnp.dot((silu_g * u).astype(jnp.bfloat16), w2,
                 preferred_element_type=jnp.float32)          # (R, DIM)
    out = h_res + ff

    # ---- 128-lane-dense output slab: [out | roped rep. keys | rep. values | 0] ----
    pad = jnp.zeros((R, OUT_PAD - DIM - 2 * QW), jnp.float32)
    out_ref[...] = jnp.concatenate([out, k, v, pad], axis=-1)  # (R, 128)


# ------------------------------ glue / wrapper ------------------------------
def _rope_head_tables():
    """Per-head (L, HEAD_DIM) cos/sin tables matching the torch RoPE forward
    (including its freq-broadcast behavior): out = x*a + swap_pairs(x)*b."""
    n = HEAD_DIM // 2
    freqs = 1.0 / (ROPE_THETA ** (jnp.arange(0, n, 2, dtype=jnp.float32) / n))
    t = jnp.arange(L, dtype=jnp.float32)
    ang = t[:, None] * freqs[None, :]
    cos_p = jnp.broadcast_to(jnp.cos(ang), (L, n))
    sin_p = jnp.broadcast_to(jnp.sin(ang), (L, n))
    a_head = jnp.stack([cos_p, -cos_p], axis=-1).reshape(L, HEAD_DIM)
    b_head = jnp.stack([sin_p, sin_p], axis=-1).reshape(L, HEAD_DIM)
    return a_head, b_head


def _transformer_block_impl(x, params):
    wq, wk, wv, wo, w1, w2, w3, anw, fnw = params

    # --- weight fusion glue (traced once, fused under jit) ---
    perm = jax.nn.one_hot(jnp.arange(QW) ^ 1, QW, dtype=jnp.float32)  # pair swap
    wq_s = wq.T * SCALE                                               # fold q scale
    wk_rep = jnp.repeat(wk.T.reshape(DIM, N_KV_HEADS, HEAD_DIM),
                        REPEATS, axis=1).reshape(DIM, QW)             # fold GQA repeat
    wv_rep = jnp.repeat(wv.T.reshape(DIM, N_KV_HEADS, HEAD_DIM),
                        REPEATS, axis=1).reshape(DIM, QW)
    w_qkv = jnp.concatenate(
        [wq_s, wk_rep, wv_rep, wq_s @ perm, wk_rep @ perm], axis=1)   # (DIM, 80)
    w13 = jnp.concatenate([w1.T, w3.T], axis=1)                       # (DIM, 128)
    w_dim = jnp.concatenate([w13, w_qkv], axis=1).astype(jnp.bfloat16)  # (DIM, 208)
    w_out = jnp.concatenate([wo.T, w2.T], axis=0).astype(jnp.bfloat16)  # (80, DIM)

    # --- constants slab: [batch bias | attn-norm w | ffn-norm w | cos | sin] ---
    a_head, b_head = _rope_head_tables()
    a = jnp.tile(a_head, (B, N_HEADS))                                # (R, QW)
    b = jnp.tile(b_head, (B, N_HEADS))
    row_batch = jnp.arange(R) // L
    bias_bb = jnp.where(row_batch[:, None] == row_batch[None, :],
                        0.0, -1e30).astype(jnp.float32)               # (R, R)
    bias = jnp.tile(bias_bb, (1, N_HEADS))                            # (R, HR)
    consts = jnp.concatenate(
        [bias,
         jnp.broadcast_to(anw.reshape(1, DIM), (R, DIM)),
         jnp.broadcast_to(fnw.reshape(1, DIM), (R, DIM)),
         a, b], axis=1)                                               # (R, 160)

    # head-block 0/1 mask shared by key rows, value rows and softmax denominator
    vmask = (jnp.arange(HR)[:, None] // R ==
             jnp.arange(QW)[None, :] // HEAD_DIM).astype(jnp.float32)  # (HR, QW)

    # No grid: the whole (tiny) problem is one block; every operand is a full
    # array in VMEM, so no BlockSpecs / pipelining / per-step overhead.
    slab = pl.pallas_call(
        transformer_block_kernel,
        out_shape=jax.ShapeDtypeStruct((R, OUT_PAD), jnp.float32),
    )(x.reshape(R, DIM), w_dim, w_out, consts, vmask)

    out = slab[:, :DIM].reshape(B, L, DIM)
    keys = slab[:, DIM:DIM + QW].reshape(B, L, N_HEADS, HEAD_DIM).transpose(0, 2, 1, 3)
    vals = slab[:, DIM + QW:DIM + 2 * QW].reshape(B, L, N_HEADS, HEAD_DIM).transpose(0, 2, 1, 3)
    return out, (keys, vals)


transformer_block = jax.jit(_transformer_block_impl)


# --------------------------- pure-JAX reference -----------------------------
def ref_forward(x, params):
    wq, wk, wv, wo, w1, w2, w3, anw, fnw = params

    def rmsnorm(y, w):
        ms = jnp.mean(y * y, axis=-1, keepdims=True)
        return w * (y * lax.rsqrt(ms + NORM_EPS))

    def rope(y):  # (B, H, S, hd), traditional, offset 0
        n = HEAD_DIM // 2
        freqs = 1.0 / (ROPE_THETA ** (jnp.arange(0, n, 2, dtype=jnp.float32) / n))
        t = jnp.arange(y.shape[2], dtype=jnp.float32)
        tc = jnp.cos(t[:, None] * freqs[None, :])
        ts = jnp.sin(t[:, None] * freqs[None, :])
        xe, xo = y[..., 0::2], y[..., 1::2]
        return jnp.stack([xe * tc + xo * ts, xe * ts - xo * tc], axis=-1).reshape(y.shape)

    xn = rmsnorm(x, anw)
    q = (xn @ wq.T).reshape(B, L, N_HEADS, HEAD_DIM).transpose(0, 2, 1, 3)
    k = (xn @ wk.T).reshape(B, L, N_KV_HEADS, HEAD_DIM).transpose(0, 2, 1, 3)
    v = (xn @ wv.T).reshape(B, L, N_KV_HEADS, HEAD_DIM).transpose(0, 2, 1, 3)
    k = jnp.repeat(k, REPEATS, axis=1)
    v = jnp.repeat(v, REPEATS, axis=1)
    q, k = rope(q), rope(k)
    s = (q * SCALE) @ jnp.swapaxes(k, -1, -2)
    p = jax.nn.softmax(s, axis=-1)
    o = (p @ v).transpose(0, 2, 1, 3).reshape(B, L, -1)
    h = x + o @ wo.T
    hn = rmsnorm(h, fnw)
    ff = (jax.nn.silu(hn @ w1.T) * (hn @ w3.T)) @ w2.T
    return h + ff, (k, v)


# ---------------------------------- main -------------------------------------
if __name__ == "__main__":
    key = jax.random.PRNGKey(0)
    ks = jax.random.split(key, 9)
    params = (
        0.05 * jax.random.normal(ks[0], (QW, DIM), jnp.float32),      # wq
        0.05 * jax.random.normal(ks[1], (KVW, DIM), jnp.float32),     # wk
        0.05 * jax.random.normal(ks[2], (KVW, DIM), jnp.float32),     # wv
        0.05 * jax.random.normal(ks[3], (DIM, QW), jnp.float32),      # wo
        0.05 * jax.random.normal(ks[4], (HIDDEN, DIM), jnp.float32),  # w1
        0.05 * jax.random.normal(ks[5], (DIM, HIDDEN), jnp.float32),  # w2
        0.05 * jax.random.normal(ks[6], (HIDDEN, DIM), jnp.float32),  # w3
        jnp.ones((DIM,), jnp.float32),                                # attention_norm.weight
        jnp.ones((DIM,), jnp.float32),                                # ffn_norm.weight
    )
    x = jax.random.normal(ks[7], (B, L, DIM), jnp.float32)

    out, (keys, vals) = transformer_block(x, params)
    jax.block_until_ready((out, keys, vals))

    ref_out, (ref_k, ref_v) = ref_forward(x, params)
    assert jnp.allclose(out, ref_out, atol=2e-2, rtol=2e-2), "output mismatch"
    assert jnp.allclose(keys, ref_k, atol=2e-2, rtol=2e-2), "key cache mismatch"
    assert jnp.allclose(vals, ref_v, atol=2e-2, rtol=2e-2), "value cache mismatch"

    print("KERNEL_OK")
</pallas_src>

<mosaic_0001>
module attributes {stable_mosaic.version = 11 : i64} {
  func.func @transformer_block_kernel(%arg0: memref<16x32xf32, #tpu.memory_space<vmem>>, %arg1: memref<32x208xbf16, #tpu.memory_space<vmem>>, %arg2: memref<80x32xbf16, #tpu.memory_space<vmem>>, %arg3: memref<16x160xf32, #tpu.memory_space<vmem>>, %arg4: memref<64x16xf32, #tpu.memory_space<vmem>>, %arg5: memref<16x128xf32, #tpu.memory_space<vmem>>) attributes {dimension_semantics = [], scalar_prefetch = 0 : i64, scratch_operands = 0 : i64, tpu.core_type = #tpu.core_type<tc>} {
    %c0 = arith.constant 0 : index
    %c0_0 = arith.constant 0 : index
    %0 = vector.load %arg0[%c0, %c0_0] : memref<16x32xf32, #tpu.memory_space<vmem>>, vector<16x32xf32>
    %c0_1 = arith.constant 0 : index
    %c0_2 = arith.constant 0 : index
    %1 = vector.load %arg3[%c0_1, %c0_2] : memref<16x160xf32, #tpu.memory_space<vmem>>, vector<16x64xf32>
    %c0_3 = arith.constant 0 : index
    %c64 = arith.constant 64 : index
    %2 = vector.load %arg3[%c0_3, %c64] : memref<16x160xf32, #tpu.memory_space<vmem>>, vector<16x32xf32>
    %c0_4 = arith.constant 0 : index
    %c96 = arith.constant 96 : index
    %3 = vector.load %arg3[%c0_4, %c96] : memref<16x160xf32, #tpu.memory_space<vmem>>, vector<16x32xf32>
    %c0_5 = arith.constant 0 : index
    %c128 = arith.constant 128 : index
    %4 = vector.load %arg3[%c0_5, %c128] : memref<16x160xf32, #tpu.memory_space<vmem>>, vector<16x16xf32>
    %c0_6 = arith.constant 0 : index
    %c144 = arith.constant 144 : index
    %5 = vector.load %arg3[%c0_6, %c144] : memref<16x160xf32, #tpu.memory_space<vmem>>, vector<16x16xf32>
    %c0_7 = arith.constant 0 : index
    %c0_8 = arith.constant 0 : index
    %6 = vector.load %arg4[%c0_7, %c0_8] : memref<64x16xf32, #tpu.memory_space<vmem>>, vector<64x16xf32>
    %7 = arith.mulf %0, %0 : vector<16x32xf32>
    %cst = arith.constant dense<0.000000e+00> : vector<16xf32>
    %8 = vector.multi_reduction <add>, %7, %cst [1] : vector<16x32xf32> to vector<16xf32>
    %9 = vector.shape_cast %8 : vector<16xf32> to vector<16x1xf32>
    %cst_9 = arith.constant 3.200000e+01 : f32
    %10 = vector.broadcast %cst_9 : f32 to vector<16x1xf32>
    %11 = arith.divf %9, %10 : vector<16x1xf32>
    %cst_10 = arith.constant 9.99999974E-6 : f32
    %12 = vector.broadcast %cst_10 : f32 to vector<16x1xf32>
    %13 = arith.addf %11, %12 : vector<16x1xf32>
    %14 = math.rsqrt %13 : vector<16x1xf32>
    %15 = vector.broadcast %14 : vector<16x1xf32> to vector<16x32xf32>
    %16 = arith.mulf %0, %15 : vector<16x32xf32>
    %17 = arith.mulf %2, %16 : vector<16x32xf32>
    %c0_11 = arith.constant 0 : index
    %c128_12 = arith.constant 128 : index
    %18 = vector.load %arg1[%c0_11, %c128_12] : memref<32x208xbf16, #tpu.memory_space<vmem>>, vector<32x80xbf16>
    %19 = arith.truncf %17 : vector<16x32xf32> to vector<16x32xbf16>
    %cst_13 = arith.constant dense<0.000000e+00> : vector<16x80xf32>
    %20 = tpu.matmul %19, %18, %cst_13 {dimension_numbers = #tpu.dot_dimension_numbers<[1], [0], [0], [1], [0, 0, 1, 1], [], []>} : vector<16x32xbf16>, vector<32x80xbf16>, vector<16x80xf32> -> vector<16x80xf32>
    %21 = vector.extract_strided_slice %20 {offsets = [0, 0], sizes = [16, 16], strides = [1, 1]} : vector<16x80xf32> to vector<16x16xf32>
    %22 = vector.extract_strided_slice %20 {offsets = [0, 16], sizes = [16, 16], strides = [1, 1]} : vector<16x80xf32> to vector<16x16xf32>
    %23 = vector.extract_strided_slice %20 {offsets = [0, 32], sizes = [16, 16], strides = [1, 1]} : vector<16x80xf32> to vector<16x16xf32>
    %24 = vector.extract_strided_slice %20 {offsets = [0, 48], sizes = [16, 16], strides = [1, 1]} : vector<16x80xf32> to vector<16x16xf32>
    %25 = vector.extract_strided_slice %20 {offsets = [0, 64], sizes = [16, 16], strides = [1, 1]} : vector<16x80xf32> to vector<16x16xf32>
    %26 = arith.mulf %21, %4 : vector<16x16xf32>
    %27 = arith.mulf %24, %5 : vector<16x16xf32>
    %28 = arith.addf %26, %27 : vector<16x16xf32>
    %29 = arith.mulf %22, %4 : vector<16x16xf32>
    %30 = arith.mulf %25, %5 : vector<16x16xf32>
    %31 = arith.addf %29, %30 : vector<16x16xf32>
    %32 = tpu.concatenate %31, %31, %31, %31 in 0 : vector<16x16xf32>, vector<16x16xf32>, vector<16x16xf32>, vector<16x16xf32> -> vector<64x16xf32>
    %33 = arith.mulf %32, %6 : vector<64x16xf32>
    %34 = arith.truncf %33 : vector<64x16xf32> to vector<64x16xbf16>
    %35 = tpu.concatenate %23, %23, %23, %23 in 0 : vector<16x16xf32>, vector<16x16xf32>, vector<16x16xf32>, vector<16x16xf32> -> vector<64x16xf32>
    %36 = arith.mulf %35, %6 : vector<64x16xf32>
    %37 = arith.truncf %28 : vector<16x16xf32> to vector<16x16xbf16>
    %cst_14 = arith.constant dense<0.000000e+00> : vector<16x64xf32>
    %38 = tpu.matmul %37, %34, %cst_14 {dimension_numbers = #tpu.dot_dimension_numbers<[1], [1], [0], [0], [0, 0, 1, 0], [], []>} : vector<16x16xbf16>, vector<64x16xbf16>, vector<16x64xf32> -> vector<16x64xf32>
    %39 = arith.addf %38, %1 : vector<16x64xf32>
    %cst_15 = arith.constant dense<0xFF800000> : vector<16xf32>
    %40 = vector.multi_reduction <maximumf>, %39, %cst_15 [1] : vector<16x64xf32> to vector<16xf32>
    %41 = vector.shape_cast %40 : vector<16xf32> to vector<16x1xf32>
    %42 = vector.broadcast %41 : vector<16x1xf32> to vector<16x64xf32>
    %43 = arith.subf %39, %42 : vector<16x64xf32>
    %44 = math.exp %43 : vector<16x64xf32>
    %45 = tpu.concatenate %36, %6 in 1 : vector<64x16xf32>, vector<64x16xf32> -> vector<64x32xf32>
    %46 = arith.truncf %45 : vector<64x32xf32> to vector<64x32xbf16>
    %47 = arith.truncf %44 : vector<16x64xf32> to vector<16x64xbf16>
    %cst_16 = arith.constant dense<0.000000e+00> : vector<16x32xf32>
    %48 = tpu.matmul %47, %46, %cst_16 {dimension_numbers = #tpu.dot_dimension_numbers<[1], [0], [0], [1], [0, 0, 1, 1], [], []>} : vector<16x64xbf16>, vector<64x32xbf16>, vector<16x32xf32> -> vector<16x32xf32>
    %49 = vector.extract_strided_slice %48 {offsets = [0, 0], sizes = [16, 16], strides = [1, 1]} : vector<16x32xf32> to vector<16x16xf32>
    %50 = vector.extract_strided_slice %48 {offsets = [0, 16], sizes = [16, 16], strides = [1, 1]} : vector<16x32xf32> to vector<16x16xf32>
    %51 = tpu.reciprocal %50 {approx = true} : vector<16x16xf32> -> vector<16x16xf32>
    %52 = arith.mulf %49, %51 : vector<16x16xf32>
    %c0_17 = arith.constant 0 : index
    %c0_18 = arith.constant 0 : index
    %53 = vector.load %arg2[%c0_17, %c0_18] : memref<80x32xbf16, #tpu.memory_space<vmem>>, vector<16x32xbf16>
    %54 = arith.truncf %52 : vector<16x16xf32> to vector<16x16xbf16>
    %cst_19 = arith.constant dense<0.000000e+00> : vector<16x32xf32>
    %55 = tpu.matmul %54, %53, %cst_19 {dimension_numbers = #tpu.dot_dimension_numbers<[1], [0], [0], [1], [0, 0, 1, 1], [], []>} : vector<16x16xbf16>, vector<16x32xbf16>, vector<16x32xf32> -> vector<16x32xf32>
    %56 = arith.addf %0, %55 : vector<16x32xf32>
    %57 = arith.mulf %56, %56 : vector<16x32xf32>
    %cst_20 = arith.constant dense<0.000000e+00> : vector<16xf32>
    %58 = vector.multi_reduction <add>, %57, %cst_20 [1] : vector<16x32xf32> to vector<16xf32>
    %59 = vector.shape_cast %58 : vector<16xf32> to vector<16x1xf32>
    %cst_21 = arith.constant 3.200000e+01 : f32
    %60 = vector.broadcast %cst_21 : f32 to vector<16x1xf32>
    %61 = arith.divf %59, %60 : vector<16x1xf32>
    %cst_22 = arith.constant 9.99999974E-6 : f32
    %62 = vector.broadcast %cst_22 : f32 to vector<16x1xf32>
    %63 = arith.addf %61, %62 : vector<16x1xf32>
    %64 = math.rsqrt %63 : vector<16x1xf32>
    %65 = vector.broadcast %64 : vector<16x1xf32> to vector<16x32xf32>
    %66 = arith.mulf %56, %65 : vector<16x32xf32>
    %67 = arith.mulf %3, %66 : vector<16x32xf32>
    %c0_23 = arith.constant 0 : index
    %c0_24 = arith.constant 0 : index
    %68 = vector.load %arg1[%c0_23, %c0_24] : memref<32x208xbf16, #tpu.memory_space<vmem>>, vector<32x128xbf16>
    %69 = arith.truncf %67 : vector<16x32xf32> to vector<16x32xbf16>
    %cst_25 = arith.constant dense<0.000000e+00> : vector<16x128xf32>
    %70 = tpu.matmul %69, %68, %cst_25 {dimension_numbers = #tpu.dot_dimension_numbers<[1], [0], [0], [1], [0, 0, 1, 1], [], []>} : vector<16x32xbf16>, vector<32x128xbf16>, vector<16x128xf32> -> vector<16x128xf32>
    %71 = vector.extract_strided_slice %70 {offsets = [0, 0], sizes = [16, 64], strides = [1, 1]} : vector<16x128xf32> to vector<16x64xf32>
    %72 = vector.extract_strided_slice %70 {offsets = [0, 64], sizes = [16, 64], strides = [1, 1]} : vector<16x128xf32> to vector<16x64xf32>
    %cst_26 = arith.constant 0.000000e+00 : f32
    %73 = vector.broadcast %cst_26 : f32 to vector<16x64xf32>
    %74 = arith.subf %73, %71 : vector<16x64xf32>
    %75 = math.exp %74 : vector<16x64xf32>
    %cst_27 = arith.constant 1.000000e+00 : f32
    %76 = vector.broadcast %cst_27 : f32 to vector<16x64xf32>
    %77 = arith.addf %76, %75 : vector<16x64xf32>
    %78 = tpu.reciprocal %77 {approx = true} : vector<16x64xf32> -> vector<16x64xf32>
    %79 = arith.mulf %71, %78 : vector<16x64xf32>
    %c16 = arith.constant 16 : index
    %c0_28 = arith.constant 0 : index
    %80 = vector.load %arg2[%c16, %c0_28] : memref<80x32xbf16, #tpu.memory_space<vmem>>, vector<64x32xbf16>
    %81 = arith.mulf %79, %72 : vector<16x64xf32>
    %82 = arith.truncf %81 : vector<16x64xf32> to vector<16x64xbf16>
    %cst_29 = arith.constant dense<0.000000e+00> : vector<16x32xf32>
    %83 = tpu.matmul %82, %80, %cst_29 {dimension_numbers = #tpu.dot_dimension_numbers<[1], [0], [0], [1], [0, 0, 1, 1], [], []>} : vector<16x64xbf16>, vector<64x32xbf16>, vector<16x32xf32> -> vector<16x32xf32>
    %84 = arith.addf %56, %83 : vector<16x32xf32>
    %cst_30 = arith.constant 0.000000e+00 : f32
    %85 = vector.broadcast %cst_30 : f32 to vector<16x64xf32>
    %86 = tpu.concatenate %84, %31, %23, %85 in 1 : vector<16x32xf32>, vector<16x16xf32>, vector<16x16xf32>, vector<16x64xf32> -> vector<16x128xf32>
    %c0_31 = arith.constant 0 : index
    %c0_32 = arith.constant 0 : index
    %87 = vector.load %arg5[%c0_31, %c0_32] : memref<16x128xf32, #tpu.memory_space<vmem>>, vector<16x128xf32>
    tpu.vector_store %arg5[%c0_31, %c0_32], %86 {strides = array<i32>} : memref<16x128xf32, #tpu.memory_space<vmem>>, vector<16x128xf32>,
    return
  }
}

</mosaic_0001>

<llo_original>
// kernel: tile.25
$region0: #{tile.25}
  %s0 = inlined_call_operand.vmem [shape: f32[16,4,16], index: 0, kind: input, shape index: {}]
  %s1 = inlined_call_operand.vmem [shape: f32[16,64], index: 1, kind: output, shape index: {}]
  $region1: #{tile.25} parent=0
    #allocation0 [shape = 'u8[65536]{0}', space=vmem, size = 0x10000, scoped, tag = 'scoped mem for input reshape']
    %s3 = sshllo.u32 0, 4
    %s4 = smul.addr 4, 15
    %s5 = scalar_lea.vmem %s0, %s4
    %v6 = vld [vmem:[%s5] sm:%s3]
    %s7 = scalar_lea.vmem [#allocation0], 120
    %8 = vst [vmem:[%s7] sm:%s3] %v6
    %s9 = smul.addr 4, 14
    %s10 = scalar_lea.vmem %s0, %s9
    %v11 = vld [vmem:[%s10] sm:%s3]
    %s12 = scalar_lea.vmem [#allocation0], 112
    %13 = vst [vmem:[%s12] sm:%s3] %v11
    %s14 = smul.addr 4, 13
    %s15 = scalar_lea.vmem %s0, %s14
    %v16 = vld [vmem:[%s15] sm:%s3]
    %s17 = scalar_lea.vmem [#allocation0], 104
    %18 = vst [vmem:[%s17] sm:%s3] %v16
    %s19 = smul.addr 4, 12
    %s20 = scalar_lea.vmem %s0, %s19
    %v21 = vld [vmem:[%s20] sm:%s3]
    %s22 = scalar_lea.vmem [#allocation0], 96
    %23 = vst [vmem:[%s22] sm:%s3] %v21
    %s24 = smul.addr 4, 11
    %s25 = scalar_lea.vmem %s0, %s24
    %v26 = vld [vmem:[%s25] sm:%s3]
    %s27 = scalar_lea.vmem [#allocation0], 88
    %28 = vst [vmem:[%s27] sm:%s3] %v26
    %s29 = smul.addr 4, 10
    %s30 = scalar_lea.vmem %s0, %s29
    %v31 = vld [vmem:[%s30] sm:%s3]
    %s32 = scalar_lea.vmem [#allocation0], 80
    %33 = vst [vmem:[%s32] sm:%s3] %v31
    %s34 = smul.addr 4, 9
    %s35 = scalar_lea.vmem %s0, %s34
    %v36 = vld [vmem:[%s35] sm:%s3]
    %s37 = scalar_lea.vmem [#allocation0], 72
    %38 = vst [vmem:[%s37] sm:%s3] %v36
    %s39 = smul.addr 4, 8
    %s40 = scalar_lea.vmem %s0, %s39
    %v41 = vld [vmem:[%s40] sm:%s3]
    %s42 = scalar_lea.vmem [#allocation0], 64
    %43 = vst [vmem:[%s42] sm:%s3] %v41
    %s44 = smul.addr 4, 7
    %s45 = scalar_lea.vmem %s0, %s44
    %v46 = vld [vmem:[%s45] sm:%s3]
    %s47 = scalar_lea.vmem [#allocation0], 56
    %48 = vst [vmem:[%s47] sm:%s3] %v46
    %s49 = smul.addr 4, 6
    %s50 = scalar_lea.vmem %s0, %s49
    %v51 = vld [vmem:[%s50] sm:%s3]
    %s52 = scalar_lea.vmem [#allocation0], 48
    %53 = vst [vmem:[%s52] sm:%s3] %v51
    %s54 = smul.addr 4, 5
    %s55 = scalar_lea.vmem %s0, %s54
    %v56 = vld [vmem:[%s55] sm:%s3]
    %s57 = scalar_lea.vmem [#allocation0], 40
    %58 = vst [vmem:[%s57] sm:%s3] %v56
    %s59 = smul.addr 4, 4
    %s60 = scalar_lea.vmem %s0, %s59
    %v61 = vld [vmem:[%s60] sm:%s3]
    %s62 = scalar_lea.vmem [#allocation0], 32
    %63 = vst [vmem:[%s62] sm:%s3] %v61
    %s64 = smul.addr 4, 3
    %s65 = scalar_lea.vmem %s0, %s64
    %v66 = vld [vmem:[%s65] sm:%s3]
    %s67 = scalar_lea.vmem [#allocation0], 24
    %68 = vst [vmem:[%s67] sm:%s3] %v66
    %s69 = smul.addr 4, 2
    %s70 = scalar_lea.vmem %s0, %s69
    %v71 = vld [vmem:[%s70] sm:%s3]
    %s72 = scalar_lea.vmem [#allocation0], 16
    %73 = vst [vmem:[%s72] sm:%s3] %v71
    %s74 = scalar_lea.vmem %s0, 4
    %v75 = vld [vmem:[%s74] sm:%s3]
    %s76 = scalar_lea.vmem [#allocation0], 8
    %77 = vst [vmem:[%s76] sm:%s3] %v75
    %v78 = vld [vmem:[%s0] sm:%s3]
    %79 = vst [vmem:[#allocation0] sm:%s3] %v78
    %v80 = vld [vmem:[#allocation0] ss:$8 sm:$0xf]
    %v81 = vld [vmem:[#allocation0] ss:$8 sm:$0xf0]
    %vm82 = vcmask 1047556
    %v83 = vsel %vm82, %v81, %v80
    %vm84 = vcmask 130048
    %85 = vst.msk [vmem:[%s1] sm:$0xff] %vm84, %v83
    %s86 = scalar_lea.vmem [#allocation0], 64
    %v87 = vld [vmem:[%s86] ss:$8 sm:$0xf]
    %s88 = scalar_lea.vmem [#allocation0], 64
    %v89 = vld [vmem:[%s88] ss:$8 sm:$0xf0]
    %vm90 = vcmask 1047556
    %v91 = vsel %vm90, %v89, %v87
    %vm92 = vcmask 130048
    %s93 = scalar_lea.vmem %s1, 8
    %94 = vst.msk [vmem:[%s93] sm:$0xff] %vm92, %v91
    %s95 = scalar_lea.vmem [#allocation0], 3
    %v96 = vld [vmem:[%s95] ss:$8 sm:$0xf]
    %s97 = scalar_lea.vmem [#allocation0], 3
    %v98 = vld [vmem:[%s97] ss:$8 sm:$0xf0]
    %vm99 = vcmask 1047556
    %v100 = vsel %vm99, %v98, %v96
    %101 = vrot.lane.b32.xlu0 %v100, 48
    %v102 = vpop.permute.xlu0 %101
    %vm103 = vcmask 523648
    %104 = vst.msk [vmem:[%s1] sm:$0xff] %vm103, %v102
    %s105 = scalar_lea.vmem [#allocation0], 67
    %v106 = vld [vmem:[%s105] ss:$8 sm:$0xf]
    %s107 = scalar_lea.vmem [#allocation0], 67
    %v108 = vld [vmem:[%s107] ss:$8 sm:$0xf0]
    %vm109 = vcmask 1047556
    %v110 = vsel %vm109, %v108, %v106
    %111 = vrot.lane.b32.xlu0 %v110, 48
    %v112 = vpop.permute.xlu0 %111
    %vm113 = vcmask 523648
    %s114 = scalar_lea.vmem %s1, 8
    %115 = vst.msk [vmem:[%s114] sm:$0xff] %vm113, %v112
    %s116 = scalar_lea.vmem [#allocation0], 2
    %v117 = vld [vmem:[%s116] ss:$8 sm:$0xf]
    %s118 = scalar_lea.vmem [#allocation0], 2
    %v119 = vld [vmem:[%s118] ss:$8 sm:$0xf0]
    %vm120 = vcmask 1047556
    %v121 = vsel %vm120, %v119, %v117
    %122 = vrot.lane.b32.xlu0 %v121, 32
    %v123 = vpop.permute.xlu0 %122
    %vm124 = vcmask 392448
    %125 = vst.msk [vmem:[%s1] sm:$0xff] %vm124, %v123
    %s126 = scalar_lea.vmem [#allocation0], 66
    %v127 = vld [vmem:[%s126] ss:$8 sm:$0xf]
    %s128 = scalar_lea.vmem [#allocation0], 66
    %v129 = vld [vmem:[%s128] ss:$8 sm:$0xf0]
    %vm130 = vcmask 1047556
    %v131 = vsel %vm130, %v129, %v127
    %132 = vrot.lane.b32.xlu0 %v131, 32
    %v133 = vpop.permute.xlu0 %132
    %vm134 = vcmask 392448
    %s135 = scalar_lea.vmem %s1, 8
    %136 = vst.msk [vmem:[%s135] sm:$0xff] %vm134, %v133
    %s137 = scalar_lea.vmem [#allocation0], 1
    %v138 = vld [vmem:[%s137] ss:$8 sm:$0xf]
    %s139 = scalar_lea.vmem [#allocation0], 1
    %v140 = vld [vmem:[%s139] ss:$8 sm:$0xf0]
    %vm141 = vcmask 1047556
    %v142 = vsel %vm141, %v140, %v138
    %143 = vrot.lane.b32.xlu0 %v142, 16
    %v144 = vpop.permute.xlu0 %143
    %vm145 = vcmask 261248
    %146 = vst.msk [vmem:[%s1] sm:$0xff] %vm145, %v144
    %s147 = scalar_lea.vmem [#allocation0], 65
    %v148 = vld [vmem:[%s147] ss:$8 sm:$0xf]
    %s149 = scalar_lea.vmem [#allocation0], 65
    %v150 = vld [vmem:[%s149] ss:$8 sm:$0xf0]
    %vm151 = vcmask 1047556
    %v152 = vsel %vm151, %v150, %v148
    %153 = vrot.lane.b32.xlu0 %v152, 16
    %v154 = vpop.permute.xlu0 %153
    %vm155 = vcmask 261248
    %s156 = scalar_lea.vmem %s1, 8
    %157 = vst.msk [vmem:[%s156] sm:$0xff] %vm155, %v154

// kernel: tile.15
$region0: #{tile.15}
  #allocation0 [shape = 's32[1]{0}', space=sflag, size = 0x4, scoped, tag = 'scoped memory for tile.15']
  %s0 = inlined_call_operand.vmem [shape: f32[8,4], index: 0, kind: input, shape index: {}]
  %s1 = inlined_call_operand.vmem [shape: f32[2,8,4,4], index: 1, kind: output, shape index: {}]
  // Predicated region
  $region2: #{tile.15} parent=0 // pred_check
    _
  $region3: #{tile.15} parent=0 // pred_check_branch
    %3 = sbr.rel (0) target = $region5
  $region4: #{tile.15} parent=0 // pred_region
    _
  $region5: #{tile.15} parent=0 // pred_fallthru
    _
  %v4 = vld [vmem:[%s0] ss:$0 sm:$0xff]
  %5 = vst [vmem:[%s1] sm:$0x3] %v4
  %s6 = scalar_lea.vmem %s1, 8
  %7 = vst [vmem:[%s6] sm:$0x3] %v4
  %s8 = scalar_lea.vmem %s1, 16
  %9 = vst [vmem:[%s8] sm:$0x3] %v4
  %s10 = scalar_lea.vmem %s1, 24
  %11 = vst [vmem:[%s10] sm:$0x3] %v4
  %s12 = scalar_lea.vmem %s0, 1
  %v13 = vld [vmem:[%s12] ss:$0 sm:$0xff]
  %s14 = scalar_lea.vmem %s1, 2
  %15 = vst [vmem:[%s14] sm:$0x3] %v13
  %s16 = scalar_lea.vmem %s1, 10
  %17 = vst [vmem:[%s16] sm:$0x3] %v13
  %s18 = scalar_lea.vmem %s1, 18
  %19 = vst [vmem:[%s18] sm:$0x3] %v13
  %s20 = scalar_lea.vmem %s1, 26
  %21 = vst [vmem:[%s20] sm:$0x3] %v13
  %s22 = scalar_lea.vmem %s0, 2
  %v23 = vld [vmem:[%s22] ss:$0 sm:$0xff]
  %s24 = scalar_lea.vmem %s1, 4
  %25 = vst [vmem:[%s24] sm:$0x3] %v23
  %s26 = scalar_lea.vmem %s1, 12
  %27 = vst [vmem:[%s26] sm:$0x3] %v23
  %s28 = scalar_lea.vmem %s1, 20
  %29 = vst [vmem:[%s28] sm:$0x3] %v23
  %s30 = scalar_lea.vmem %s1, 28
  %31 = vst [vmem:[%s30] sm:$0x3] %v23
  %s32 = scalar_lea.vmem %s0, 3
  %v33 = vld [vmem:[%s32] ss:$0 sm:$0xff]
  %s34 = scalar_lea.vmem %s1, 6
  %35 = vst [vmem:[%s34] sm:$0x3] %v33
  %s36 = scalar_lea.vmem %s1, 14
  %37 = vst [vmem:[%s36] sm:$0x3] %v33
  %s38 = scalar_lea.vmem %s1, 22
  %39 = vst [vmem:[%s38] sm:$0x3] %v33
  %s40 = scalar_lea.vmem %s1, 30
  %41 = vst [vmem:[%s40] sm:$0x3] %v33

// kernel: tile.16
$region0: #{tile.16}
  %s0 = inlined_call_operand.vmem [shape: f32[2,8,4,4], index: 0, kind: input, shape index: {}]
  %s1 = inlined_call_operand.vmem [shape: f32[16,16], index: 1, kind: output, shape index: {}]
  $region1: #{tile.16} parent=0
    #allocation0 [shape = 'u8[65536]{0}', space=vmem, size = 0x10000, scoped, tag = 'scoped mem for input reshape']
    %s3 = sshllo.u32 0, 2
    %s4 = smul.addr 2, 15
    %s5 = scalar_lea.vmem %s0, %s4
    %v6 = vld [vmem:[%s5] sm:%s3]
    %s7 = scalar_lea.vmem [#allocation0], 120
    %8 = vst [vmem:[%s7] sm:%s3] %v6
    %s9 = smul.addr 2, 14
    %s10 = scalar_lea.vmem %s0, %s9
    %v11 = vld [vmem:[%s10] sm:%s3]
    %s12 = scalar_lea.vmem [#allocation0], 112
    %13 = vst [vmem:[%s12] sm:%s3] %v11
    %s14 = smul.addr 2, 13
    %s15 = scalar_lea.vmem %s0, %s14
    %v16 = vld [vmem:[%s15] sm:%s3]
    %s17 = scalar_lea.vmem [#allocation0], 104
    %18 = vst [vmem:[%s17] sm:%s3] %v16
    %s19 = smul.addr 2, 12
    %s20 = scalar_lea.vmem %s0, %s19
    %v21 = vld [vmem:[%s20] sm:%s3]
    %s22 = scalar_lea.vmem [#allocation0], 96
    %23 = vst [vmem:[%s22] sm:%s3] %v21
    %s24 = smul.addr 2, 11
    %s25 = scalar_lea.vmem %s0, %s24
    %v26 = vld [vmem:[%s25] sm:%s3]
    %s27 = scalar_lea.vmem [#allocation0], 88
    %28 = vst [vmem:[%s27] sm:%s3] %v26
    %s29 = smul.addr 2, 10
    %s30 = scalar_lea.vmem %s0, %s29
    %v31 = vld [vmem:[%s30] sm:%s3]
    %s32 = scalar_lea.vmem [#allocation0], 80
    %33 = vst [vmem:[%s32] sm:%s3] %v31
    %s34 = smul.addr 2, 9
    %s35 = scalar_lea.vmem %s0, %s34
    %v36 = vld [vmem:[%s35] sm:%s3]
    %s37 = scalar_lea.vmem [#allocation0], 72
    %38 = vst [vmem:[%s37] sm:%s3] %v36
    %s39 = smul.addr 2, 8
    %s40 = scalar_lea.vmem %s0, %s39
    %v41 = vld [vmem:[%s40] sm:%s3]
    %s42 = scalar_lea.vmem [#allocation0], 64
    %43 = vst [vmem:[%s42] sm:%s3] %v41
    %s44 = smul.addr 2, 7
    %s45 = scalar_lea.vmem %s0, %s44
    %v46 = vld [vmem:[%s45] sm:%s3]
    %s47 = scalar_lea.vmem [#allocation0], 56
    %48 = vst [vmem:[%s47] sm:%s3] %v46
    %s49 = smul.addr 2, 6
    %s50 = scalar_lea.vmem %s0, %s49
    %v51 = vld [vmem:[%s50] sm:%s3]
    %s52 = scalar_lea.vmem [#allocation0], 48
    %53 = vst [vmem:[%s52] sm:%s3] %v51
    %s54 = smul.addr 2, 5
    %s55 = scalar_lea.vmem %s0, %s54
    %v56 = vld [vmem:[%s55] sm:%s3]
    %s57 = scalar_lea.vmem [#allocation0], 40
    %58 = vst [vmem:[%s57] sm:%s3] %v56
    %s59 = smul.addr 2, 4
    %s60 = scalar_lea.vmem %s0, %s59
    %v61 = vld [vmem:[%s60] sm:%s3]
    %s62 = scalar_lea.vmem [#allocation0], 32
    %63 = vst [vmem:[%s62] sm:%s3] %v61
    %s64 = smul.addr 2, 3
    %s65 = scalar_lea.vmem %s0, %s64
    %v66 = vld [vmem:[%s65] sm:%s3]
    %s67 = scalar_lea.vmem [#allocation0], 24
    %68 = vst [vmem:[%s67] sm:%s3] %v66
    %s69 = smul.addr 2, 2
    %s70 = scalar_lea.vmem %s0, %s69
    %v71 = vld [vmem:[%s70] sm:%s3]
    %s72 = scalar_lea.vmem [#allocation0], 16
    %73 = vst [vmem:[%s72] sm:%s3] %v71
    %s74 = scalar_lea.vmem %s0, 2
    %v75 = vld [vmem:[%s74] sm:%s3]
    %s76 = scalar_lea.vmem [#allocation0], 8
    %77 = vst [vmem:[%s76] sm:%s3] %v75
    %v78 = vld [vmem:[%s0] sm:%s3]
    %79 = vst [vmem:[#allocation0] sm:%s3] %v78
    %v80 = vld [vmem:[#allocation0] ss:$8 sm:$0xf]
    %v81 = vld [vmem:[#allocation0] ss:$8 sm:$0xf0]
    %vm82 = vcmask 1047556
    %v83 = vsel %vm82, %v81, %v80
    %vm84 = vcmask 64512
    %85 = vst.msk [vmem:[%s1] sm:$0xff] %vm84, %v83
    %s86 = scalar_lea.vmem [#allocation0], 64
    %v87 = vld [vmem:[%s86] ss:$8 sm:$0xf]
    %s88 = scalar_lea.vmem [#allocation0], 64
    %v89 = vld [vmem:[%s88] ss:$8 sm:$0xf0]
    %vm90 = vcmask 1047556
    %v91 = vsel %vm90, %v89, %v87
    %vm92 = vcmask 64512
    %s93 = scalar_lea.vmem %s1, 8
    %94 = vst.msk [vmem:[%s93] sm:$0xff] %vm92, %v91
    %s95 = scalar_lea.vmem [#allocation0], 1
    %v96 = vld [vmem:[%s95] ss:$8 sm:$0xf]
    %s97 = scalar_lea.vmem [#allocation0], 1
    %v98 = vld [vmem:[%s97] ss:$8 sm:$0xf0]
    %vm99 = vcmask 1047556
    %v100 = vsel %vm99, %v98, %v96
    %101 = vrot.lane.b32.xlu0 %v100, 8
    %v102 = vpop.permute.xlu0 %101
    %vm103 = vcmask 130112
    %104 = vst.msk [vmem:[%s1] sm:$0xff] %vm103, %v102
    %s105 = scalar_lea.vmem [#allocation0], 65
    %v106 = vld [vmem:[%s105] ss:$8 sm:$0xf]
    %s107 = scalar_lea.vmem [#allocation0], 65
    %v108 = vld [vmem:[%s107] ss:$8 sm:$0xf0]
    %vm109 = vcmask 1047556
    %v110 = vsel %vm109, %v108, %v106
    %111 = vrot.lane.b32.xlu0 %v110, 8
    %v112 = vpop.permute.xlu0 %111
    %vm113 = vcmask 130112
    %s114 = scalar_lea.vmem %s1, 8
    %115 = vst.msk [vmem:[%s114] sm:$0xff] %vm113, %v112

// kernel: _transformer_block_impl.1
$region0: #{_transformer_block_impl.1}
  #allocation0 [shape = 'u32[]', space=smem, size = 0x4, offset = 0x4, fixed_abs, tag = 'smem constant byte address 0x4 - core index']
  #allocation1 [shape = 'u32[144,128]{1,0:T(1,128)}', space=vmem, size = 0x12000, scoped, tag = 'internal scratch']
  %s0 = inlined_call_operand.vmem [shape: f32[16,32], index: 0, kind: input, shape index: {}]
  %s1 = inlined_call_operand.vmem [shape: bf16[32,208], index: 1, kind: input, shape index: {}]
  %s2 = inlined_call_operand.vmem [shape: bf16[80,32], index: 2, kind: input, shape index: {}]
  %s3 = inlined_call_operand.vmem [shape: f32[16,160], index: 3, kind: input, shape index: {}]
  %s4 = inlined_call_operand.vmem [shape: f32[64,16], index: 4, kind: input, shape index: {}]
  %s5 = inlined_call_operand.vmem [shape: f32[16,128], index: 5, kind: output, shape index: {}]
  %s6 = sld [smem:[#allocation0]]
  $region30: #{_transformer_block_impl.1} parent=0
    _
  %s8 = ssub.s32 1, %s6
  %s9 = scalar_select 0, %s8, %s6
  // Predicated region
  $region2: #{_transformer_block_impl.1} parent=0 // pred_check
    _
  $region3: #{_transformer_block_impl.1} parent=0 // pred_check_branch
    %11 = sbr.rel (0) target = $region5
  $region4: #{_transformer_block_impl.1} parent=0 // pred_region
    _
  $region5: #{_transformer_block_impl.1} parent=0 // pred_fallthru
    _
  // Predicated region
  $region6: #{_transformer_block_impl.1} parent=0 // pred_check
    _
  $region7: #{_transformer_block_impl.1} parent=0 // pred_check_branch
    %13 = sbr.rel (0) target = $region9
  $region8: #{_transformer_block_impl.1} parent=0 // pred_region
    _
  $region9: #{_transformer_block_impl.1} parent=0 // pred_fallthru
    _
  // Predicated region
  $region10: #{_transformer_block_impl.1} parent=0 // pred_check
    _
  $region11: #{_transformer_block_impl.1} parent=0 // pred_check_branch
    %15 = sbr.rel (0) target = $region13
  $region12: #{_transformer_block_impl.1} parent=0 // pred_region
    _
  $region13: #{_transformer_block_impl.1} parent=0 // pred_fallthru
    _
  // Predicated region
  $region14: #{_transformer_block_impl.1} parent=0 // pred_check
    _
  $region15: #{_transformer_block_impl.1} parent=0 // pred_check_branch
    %17 = sbr.rel (0) target = $region17
  $region16: #{_transformer_block_impl.1} parent=0 // pred_region
    _
  $region17: #{_transformer_block_impl.1} parent=0 // pred_fallthru
    _
  // Predicated region
  $region18: #{_transformer_block_impl.1} parent=0 // pred_check
    _
  $region19: #{_transformer_block_impl.1} parent=0 // pred_check_branch
    %19 = sbr.rel (0) target = $region21
  $region20: #{_transformer_block_impl.1} parent=0 // pred_region
    _
  $region21: #{_transformer_block_impl.1} parent=0 // pred_fallthru
    _
  %v21 = vld [vmem:[%s0] sm:$0xff]
  %v22 = vld [vmem:[%s0 + $0x8] sm:$0xff]
  %v23 = vld [vmem:[%s3] sm:$0xff]
  %v24 = vld [vmem:[%s3 + $0x10] sm:$0xff]
  %v25 = vld [vmem:[%s3 + $0x8] sm:$0xff]
  %v26 = vld [vmem:[%s3 + $0x18] sm:$0xff]
  %v27 = vld [vmem:[%s4] sm:$0xff]
  %v28 = vld [vmem:[%s4 + $0x8] sm:$0xff]
  %v29 = vld [vmem:[%s4 + $0x10] sm:$0xff]
  %v30 = vld [vmem:[%s4 + $0x18] sm:$0xff]
  %v31 = vld [vmem:[%s4 + $0x20] sm:$0xff]
  %v32 = vld [vmem:[%s4 + $0x28] sm:$0xff]
  %v33 = vld [vmem:[%s4 + $0x30] sm:$0xff]
  %v34 = vld [vmem:[%s4 + $0x38] sm:$0xff]
  %v35 = vmul.f32 %v21, %v21
  %v36 = vmul.f32 %v22, %v22
  %vm37 = vcmask 261120
  %v38 = vsel %vm37, %v35, 0.0
  %39 = vadd.xlane.f32.xlu0 %v38
  %v40 = vpop.xlane.xlu0 %39
  %v41 = vsel %vm37, %v36, 0.0
  %42 = vadd.xlane.f32.xlu0 %v41
  %v43 = vpop.xlane.xlu0 %42
  %v44 = vrcp.pop 32.0
  %v45 = vmul.f32 %v40, %v44
  %v46 = vmul.f32 %v43, %v44
  %v47 = vadd.f32 %v45, 1e-05
  %v48 = vadd.f32 %v46, 1e-05
  %v49 = vrsqrt.pop %v47
  %v50 = vrsqrt.pop %v48
  %v51 = vmul.f32 %v21, %v49
  %v52 = vmul.f32 %v22, %v50
  %55 = vrot.lane.b32.xlu0 %v51, 64
  %v56 = vpop.permute.xlu0 %55
  %57 = vrot.lane.b32.xlu0 %v52, 64
  %v58 = vpop.permute.xlu0 %57
  %v61 = vmul.f32 %v23, %v56
  %v62 = vmul.f32 %v24, %v58
  %v63 = vld [vmem:[%s1 + $0x4] sm:$0xf]
  %v64 = vld [vmem:[%s1 + $0xc] sm:$0xf]
  %v65 = vld [vmem:[%s1 + $0x14] sm:$0xf]
  %v66 = vld [vmem:[%s1 + $0x1c] sm:$0xf]
  %v67 = vpack.c.bf16 %v62, %v61
  %69 = vrot.lane.b32.xlu0 %v67, 64
  %v70 = vpop.permute.xlu0 %69
  %v75 = vunpack.c.l.b16 %v63
  %v76 = vunpack.c.l.b16 %v64
  %v77 = vunpack.c.l.b16 %v65
  %v78 = vunpack.c.l.b16 %v66
  %v79 = vpack.c.b16 %v76, %v75
  %v80 = vpack.c.b16 %v78, %v77
  %v84 = vsel %vm37, %v70, 0
  %86 = vmatprep.subr.bf16.mxu0 0
  %87 = vmatpush1.bf16.msra.mxu0 %v79
  %88 = vmatprep.subr.bf16.mxu0 0
  %89 = vmatpush1.bf16.msra.mxu0 %v80
  %90 = vmatprep.subr.bf16.mxu0 0
  %91 = vmatpush1.bf16.msra.mxu0 0
  %92 = vmatprep.subr.bf16.mxu0 0
  %93 = vmatpush1.bf16.msra.mxu0 0
  %94 = vmatprep.subr.bf16.mxu0 0
  %95 = vmatpush1.bf16.msra.mxu0 0
  %96 = vmatprep.subr.bf16.mxu0 0
  %97 = vmatpush1.bf16.msra.mxu0 0
  %98 = vmatprep.subr.bf16.mxu0 0
  %99 = vmatpush1.bf16.msra.mxu0 0
  %100 = vmatprep.subr.bf16.mxu0 0
  %101 = vmatpush1.bf16.msra.mxu0 0
  %102 = vmatprep.subr.bf16.mxu0 0
  %103 = vmatpush1.bf16.msra.mxu0 0
  %104 = vmatprep.subr.bf16.mxu0 0
  %105 = vmatpush1.bf16.msra.mxu0 0
  %106 = vmatprep.subr.bf16.mxu0 0
  %107 = vmatpush1.bf16.msra.mxu0 0
  %108 = vmatprep.subr.bf16.mxu0 0
  %109 = vmatpush1.bf16.msra.mxu0 0
  %110 = vmatprep.subr.bf16.mxu0 0
  %111 = vmatpush1.bf16.msra.mxu0 0
  %112 = vmatprep.subr.bf16.mxu0 0
  %113 = vmatpush1.bf16.msra.mxu0 0
  %114 = vmatprep.subr.bf16.mxu0 0
  %115 = vmatpush1.bf16.msra.mxu0 0
  %116 = vmatprep.subr.bf16.mxu0 0
  %117 = vmatpush1.bf16.msra.mxu0 0
  %118 = vmatprep.mubr.bf16.mxu0 0
  %119 = vmatmul.mubr.bf16.gmra.mrb[0].mxu0 %v84
  %v120 = vpop.f32.mrb[0].mxu0
  %v121 = vadd.f32 0.0, %v120
  %v122 = vpop.f32.mrb[0].mxu0
  %v123 = vpop.f32.mrb[0].mxu0
  %v124 = vadd.f32 0.0, %v123
  %v125 = vpop.f32.mrb[0].mxu0
  %126 = vdwg.mxu0
  %v127 = vmul.f32 %v121, %v25
  %v128 = vmul.f32 %v124, %v26
  %131 = vrot.lane.b32.xlu0 %v25, 32
  %v132 = vpop.permute.xlu0 %131
  %133 = vrot.lane.b32.xlu0 %v26, 32
  %v134 = vpop.permute.xlu0 %133
  %v137 = vmul.f32 %v121, %v132
  %v138 = vmul.f32 %v124, %v134
  %141 = vrot.lane.b32.xlu0 %v137, 80
  %v142 = vpop.permute.xlu0 %141
  %143 = vrot.lane.b32.xlu0 %v138, 80
  %v144 = vpop.permute.xlu0 %143
  %v147 = vadd.f32 %v127, %v142
  %v148 = vadd.f32 %v128, %v144
  %149 = vrot.lane.b32.xlu0 %v25, 16
  %v150 = vpop.permute.xlu0 %149
  %151 = vrot.lane.b32.xlu0 %v26, 16
  %v152 = vpop.permute.xlu0 %151
  %v155 = vmul.f32 %v121, %v150
  %v156 = vmul.f32 %v124, %v152
  %157 = vrot.lane.b32.xlu0 %v25, 48
  %v158 = vpop.permute.xlu0 %157
  %159 = vrot.lane.b32.xlu0 %v26, 48
  %v160 = vpop.permute.xlu0 %159
  %v163 = vmul.f32 %v121, %v158
  %v164 = vmul.f32 %v124, %v160
  %167 = vrot.lane.b32.xlu0 %v163, 80
  %v168 = vpop.permute.xlu0 %167
  %169 = vrot.lane.b32.xlu0 %v164, 80
  %v170 = vpop.permute.xlu0 %169
  %v173 = vadd.f32 %v155, %v168
  %v174 = vadd.f32 %v156, %v170
  %183 = vrot.lane.b32.xlu0 %v27, 16
  %v184 = vpop.permute.xlu0 %183
  %185 = vrot.lane.b32.xlu0 %v28, 16
  %v186 = vpop.permute.xlu0 %185
  %187 = vrot.lane.b32.xlu0 %v29, 16
  %v188 = vpop.permute.xlu0 %187
  %189 = vrot.lane.b32.xlu0 %v30, 16
  %v190 = vpop.permute.xlu0 %189
  %191 = vrot.lane.b32.xlu0 %v31, 16
  %v192 = vpop.permute.xlu0 %191
  %193 = vrot.lane.b32.xlu0 %v32, 16
  %v194 = vpop.permute.xlu0 %193
  %195 = vrot.lane.b32.xlu0 %v33, 16
  %v196 = vpop.permute.xlu0 %195
  %197 = vrot.lane.b32.xlu0 %v34, 16
  %v198 = vpop.permute.xlu0 %197
  %v207 = vmul.f32 %v173, %v184
  %v208 = vmul.f32 %v174, %v186
  %v209 = vmul.f32 %v173, %v188
  %v210 = vmul.f32 %v174, %v190
  %v211 = vmul.f32 %v173, %v192
  %v212 = vmul.f32 %v174, %v194
  %v213 = vmul.f32 %v173, %v196
  %v214 = vmul.f32 %v174, %v198
  %v215 = vpack.c.bf16 %v208, %v207
  %v216 = vpack.c.bf16 %v210, %v209
  %v217 = vpack.c.bf16 %v212, %v211
  %v218 = vpack.c.bf16 %v214, %v213
  %219 = vrot.lane.b32.xlu0 %v27, 32
  %v220 = vpop.permute.xlu0 %219
  %221 = vrot.lane.b32.xlu0 %v28, 32
  %v222 = vpop.permute.xlu0 %221
  %223 = vrot.lane.b32.xlu0 %v29, 32
  %v224 = vpop.permute.xlu0 %223
  %225 = vrot.lane.b32.xlu0 %v30, 32
  %v226 = vpop.permute.xlu0 %225
  %227 = vrot.lane.b32.xlu0 %v31, 32
  %v228 = vpop.permute.xlu0 %227
  %229 = vrot.lane.b32.xlu0 %v32, 32
  %v230 = vpop.permute.xlu0 %229
  %231 = vrot.lane.b32.xlu0 %v33, 32
  %v232 = vpop.permute.xlu0 %231
  %233 = vrot.lane.b32.xlu0 %v34, 32
  %v234 = vpop.permute.xlu0 %233
  %v243 = vmul.f32 %v121, %v220
  %v244 = vmul.f32 %v124, %v222
  %v245 = vmul.f32 %v121, %v224
  %v246 = vmul.f32 %v124, %v226
  %v247 = vmul.f32 %v121, %v228
  %v248 = vmul.f32 %v124, %v230
  %v249 = vmul.f32 %v121, %v232
  %v250 = vmul.f32 %v124, %v234
  %v251 = vpack.c.bf16 %v148, %v147
  %256 = vrot.lane.b32.xlu0 %v215, 112
  %v257 = vpop.permute.xlu0 %256
  %258 = vrot.lane.b32.xlu0 %v216, 112
  %v259 = vpop.permute.xlu0 %258
  %260 = vrot.lane.b32.xlu0 %v217, 112
  %v261 = vpop.permute.xlu0 %260
  %262 = vrot.lane.b32.xlu0 %v218, 112
  %v263 = vpop.permute.xlu0 %262
  %vm264 = vcmask 130048
  %v266 = vsel %vm264, %v251, 0
  %v269 = vsel %vm264, %v257, 0
  %v272 = vsel %vm264, %v259, 0
  %v275 = vsel %vm264, %v261, 0
  %v278 = vsel %vm264, %v263, 0
  %280 = vmatprep.subr.bf16.mxu0 0
  %281 = vmatpush1.bf16.xpose.msra.mxu0 %v269
  %282 = vmatprep.subr.bf16.mxu0 0
  %283 = vmatpush1.bf16.xpose.msra.mxu0 %v272
  %284 = vmatprep.subr.bf16.mxu0 0
  %285 = vmatpush1.bf16.xpose.msra.mxu0 %v275
  %286 = vmatprep.subr.bf16.mxu0 0
  %287 = vmatpush1.bf16.xpose.msra.mxu0 %v278
  %288 = vmatprep.subr.bf16.mxu0 0
  %289 = vmatpush1.bf16.xpose.msra.mxu0 0
  %290 = vmatprep.subr.bf16.mxu0 0
  %291 = vmatpush1.bf16.xpose.msra.mxu0 0
  %292 = vmatprep.subr.bf16.mxu0 0
  %293 = vmatpush1.bf16.xpose.msra.mxu0 0
  %294 = vmatprep.subr.bf16.mxu0 0
  %295 = vmatpush1.bf16.xpose.msra.mxu0 0
  %296 = vmatprep.subr.bf16.mxu0 0
  %297 = vmatpush1.bf16.xpose.msra.mxu0 0
  %298 = vmatprep.subr.bf16.mxu0 0
  %299 = vmatpush1.bf16.xpose.msra.mxu0 0
  %300 = vmatprep.subr.bf16.mxu0 0
  %301 = vmatpush1.bf16.xpose.msra.mxu0 0
  %302 = vmatprep.subr.bf16.mxu0 0
  %303 = vmatpush1.bf16.xpose.msra.mxu0 0
  %304 = vmatprep.subr.bf16.mxu0 0
  %305 = vmatpush1.bf16.xpose.msra.mxu0 0
  %306 = vmatprep.subr.bf16.mxu0 0
  %307 = vmatpush1.bf16.xpose.msra.mxu0 0
  %308 = vmatprep.subr.bf16.mxu0 0
  %309 = vmatpush1.bf16.xpose.msra.mxu0 0
  %310 = vmatprep.subr.bf16.mxu0 0
  %311 = vmatpush1.bf16.xpose.msra.mxu0 0
  %312 = vmatprep.mubr.bf16.mxu0 0
  %313 = vmatmul.mubr.bf16.gmra.mrb[0].mxu0 %v266
  %v314 = vpop.f32.mrb[0].mxu0
  %v315 = vadd.f32 %v23, %v314
  %v316 = vpop.f32.mrb[0].mxu0
  %v317 = vpop.f32.mrb[0].mxu0
  %v318 = vadd.f32 %v24, %v317
  %v319 = vpop.f32.mrb[0].mxu0
  %320 = vdwg.mxu0
  %vm321 = vcmask 523264
  %v322 = vsel %vm321, %v315, -inf
  %323 = vmax.xlane.f32.xlu0 %v322
  %v324 = vpop.xlane.xlu0 %323
  %v325 = vsel %vm321, %v318, -inf
  %326 = vmax.xlane.f32.xlu0 %v325
  %v327 = vpop.xlane.xlu0 %326
  %v328 = vsub.f32 %v315, %v324
  %v329 = vsub.f32 %v318, %v327
  %v330 = vmul.f32 %v328, 1.442695
  %v331 = vpow.pop %v330
  %v332 = vmul.f32 %v329, 1.442695
  %v333 = vpow.pop %v332
  %342 = vrot.lane.b32.xlu0 %v243, 96
  %v343 = vpop.permute.xlu0 %342
  %344 = vrot.lane.b32.xlu0 %v244, 96
  %v345 = vpop.permute.xlu0 %344
  %346 = vrot.lane.b32.xlu0 %v245, 96
  %v347 = vpop.permute.xlu0 %346
  %348 = vrot.lane.b32.xlu0 %v246, 96
  %v349 = vpop.permute.xlu0 %348
  %350 = vrot.lane.b32.xlu0 %v247, 96
  %v351 = vpop.permute.xlu0 %350
  %352 = vrot.lane.b32.xlu0 %v248, 96
  %v353 = vpop.permute.xlu0 %352
  %354 = vrot.lane.b32.xlu0 %v249, 96
  %v355 = vpop.permute.xlu0 %354
  %356 = vrot.lane.b32.xlu0 %v250, 96
  %v357 = vpop.permute.xlu0 %356
  %v366 = vsel %vm264, %v343, %v184
  %v367 = vsel %vm264, %v345, %v186
  %v368 = vsel %vm264, %v347, %v188
  %v369 = vsel %vm264, %v349, %v190
  %v370 = vsel %vm264, %v351, %v192
  %v371 = vsel %vm264, %v353, %v194
  %v372 = vsel %vm264, %v355, %v196
  %v373 = vsel %vm264, %v357, %v198
  %v374 = vpack.c.bf16 %v367, %v366
  %v375 = vpack.c.bf16 %v369, %v368
  %v376 = vpack.c.bf16 %v371, %v370
  %v377 = vpack.c.bf16 %v373, %v372
  %v378 = vpack.c.bf16 %v333, %v331
  %v380 = vsel %vm321, %v378, 0
  %382 = vmatprep.subr.bf16.mxu0 0
  %383 = vmatpush1.bf16.msra.mxu0 %v374
  %384 = vmatprep.subr.bf16.mxu0 0
  %385 = vmatpush1.bf16.msra.mxu0 %v375
  %386 = vmatprep.subr.bf16.mxu0 0
  %387 = vmatpush1.bf16.msra.mxu0 %v376
  %388 = vmatprep.subr.bf16.mxu0 0
  %389 = vmatpush1.bf16.msra.mxu0 %v377
  %390 = vmatprep.subr.bf16.mxu0 0
  %391 = vmatpush1.bf16.msra.mxu0 0
  %392 = vmatprep.subr.bf16.mxu0 0
  %393 = vmatpush1.bf16.msra.mxu0 0
  %394 = vmatprep.subr.bf16.mxu0 0
  %395 = vmatpush1.bf16.msra.mxu0 0
  %396 = vmatprep.subr.bf16.mxu0 0
  %397 = vmatpush1.bf16.msra.mxu0 0
  %398 = vmatprep.subr.bf16.mxu0 0
  %399 = vmatpush1.bf16.msra.mxu0 0
  %400 = vmatprep.subr.bf16.mxu0 0
  %401 = vmatpush1.bf16.msra.mxu0 0
  %402 = vmatprep.subr.bf16.mxu0 0
  %403 = vmatpush1.bf16.msra.mxu0 0
  %404 = vmatprep.subr.bf16.mxu0 0
  %405 = vmatpush1.bf16.msra.mxu0 0
  %406 = vmatprep.subr.bf16.mxu0 0
  %407 = vmatpush1.bf16.msra.mxu0 0
  %408 = vmatprep.subr.bf16.mxu0 0
  %409 = vmatpush1.bf16.msra.mxu0 0
  %410 = vmatprep.subr.bf16.mxu0 0
  %411 = vmatpush1.bf16.msra.mxu0 0
  %412 = vmatprep.subr.bf16.mxu0 0
  %413 = vmatpush1.bf16.msra.mxu0 0
  %414 = vmatprep.mubr.bf16.mxu0 0
  %415 = vmatmul.mubr.bf16.gmra.mrb[0].mxu0 %v380
  %v416 = vpop.f32.mrb[0].mxu0
  %v417 = vadd.f32 0.0, %v416
  %v418 = vpop.f32.mrb[0].mxu0
  %v419 = vpop.f32.mrb[0].mxu0
  %v420 = vadd.f32 0.0, %v419
  %v421 = vpop.f32.mrb[0].mxu0
  %422 = vdwg.mxu0
  %v423 = vrcp.pop %v417
  %v424 = vrcp.pop %v420
  %427 = vrot.lane.b32.xlu0 %v423, 112
  %v428 = vpop.permute.xlu0 %427
  %429 = vrot.lane.b32.xlu0 %v424, 112
  %v430 = vpop.permute.xlu0 %429
  %v433 = vmul.f32 %v417, %v428
  %v434 = vmul.f32 %v420, %v430
  %v435 = vld [vmem:[%s2] sm:$0xf]
  %v436 = vld [vmem:[%s2 + $0x4] sm:$0xf]
  %v437 = vpack.c.bf16 %v434, %v433
  %v440 = vunpack.c.l.b16 %v435
  %v441 = vunpack.c.l.b16 %v436
  %v442 = vpack.c.b16 %v441, %v440
  %v445 = vsel %vm264, %v437, 0
  %447 = vmatprep.subr.bf16.mxu0 0
  %448 = vmatpush1.bf16.msra.mxu0 %v442
  %449 = vmatprep.subr.bf16.mxu0 0
  %450 = vmatpush1.bf16.msra.mxu0 0
  %451 = vmatprep.subr.bf16.mxu0 0
  %452 = vmatpush1.bf16.msra.mxu0 0
  %453 = vmatprep.subr.bf16.mxu0 0
  %454 = vmatpush1.bf16.msra.mxu0 0
  %455 = vmatprep.subr.bf16.mxu0 0
  %456 = vmatpush1.bf16.msra.mxu0 0
  %457 = vmatprep.subr.bf16.mxu0 0
  %458 = vmatpush1.bf16.msra.mxu0 0
  %459 = vmatprep.subr.bf16.mxu0 0
  %460 = vmatpush1.bf16.msra.mxu0 0
  %461 = vmatprep.subr.bf16.mxu0 0
  %462 = vmatpush1.bf16.msra.mxu0 0
  %463 = vmatprep.subr.bf16.mxu0 0
  %464 = vmatpush1.bf16.msra.mxu0 0
  %465 = vmatprep.subr.bf16.mxu0 0
  %466 = vmatpush1.bf16.msra.mxu0 0
  %467 = vmatprep.subr.bf16.mxu0 0
  %468 = vmatpush1.bf16.msra.mxu0 0
  %469 = vmatprep.subr.bf16.mxu0 0
  %470 = vmatpush1.bf16.msra.mxu0 0
  %471 = vmatprep.subr.bf16.mxu0 0
  %472 = vmatpush1.bf16.msra.mxu0 0
  %473 = vmatprep.subr.bf16.mxu0 0
  %474 = vmatpush1.bf16.msra.mxu0 0
  %475 = vmatprep.subr.bf16.mxu0 0
  %476 = vmatpush1.bf16.msra.mxu0 0
  %477 = vmatprep.subr.bf16.mxu0 0
  %478 = vmatpush1.bf16.msra.mxu0 0
  %479 = vmatprep.mubr.bf16.mxu0 0
  %480 = vmatmul.mubr.bf16.gmra.mrb[0].mxu0 %v445
  %v481 = vpop.f32.mrb[0].mxu0
  %v482 = vadd.f32 0.0, %v481
  %v483 = vpop.f32.mrb[0].mxu0
  %v484 = vpop.f32.mrb[0].mxu0
  %v485 = vadd.f32 0.0, %v484
  %v486 = vpop.f32.mrb[0].mxu0
  %487 = vdwg.mxu0
  %v488 = vadd.f32 %v21, %v482
  %v489 = vadd.f32 %v22, %v485
  %v490 = vmul.f32 %v488, %v488
  %v491 = vmul.f32 %v489, %v489
  %v492 = vsel %vm37, %v490, 0.0
  %493 = vadd.xlane.f32.xlu0 %v492
  %v494 = vpop.xlane.xlu0 %493
  %v495 = vsel %vm37, %v491, 0.0
  %496 = vadd.xlane.f32.xlu0 %v495
  %v497 = vpop.xlane.xlu0 %496
  %v498 = vmul.f32 %v494, %v44
  %v499 = vmul.f32 %v497, %v44
  %v500 = vadd.f32 %v498, 1e-05
  %v501 = vadd.f32 %v499, 1e-05
  %v502 = vrsqrt.pop %v500
  %v503 = vrsqrt.pop %v501
  %v504 = vmul.f32 %v488, %v502
  %v505 = vmul.f32 %v489, %v503
  %508 = vrot.lane.b32.xlu0 %v504, 96
  %v509 = vpop.permute.xlu0 %508
  %510 = vrot.lane.b32.xlu0 %v505, 96
  %v511 = vpop.permute.xlu0 %510
  %v514 = vmul.f32 %v23, %v509
  %v515 = vmul.f32 %v24, %v511
  %v516 = vld [vmem:[%s1] sm:$0xf]
  %v517 = vld [vmem:[%s1 + $0x8] sm:$0xf]
  %v518 = vld [vmem:[%s1 + $0x10] sm:$0xf]
  %v519 = vld [vmem:[%s1 + $0x18] sm:$0xf]
  %v520 = vpack.c.bf16 %v515, %v514
  %522 = vrot.lane.b32.xlu0 %v520, 32
  %v523 = vpop.permute.xlu0 %522
  %v528 = vunpack.c.l.b16 %v516
  %v529 = vunpack.c.l.b16 %v517
  %v530 = vunpack.c.l.b16 %v518
  %v531 = vunpack.c.l.b16 %v519
  %v532 = vpack.c.b16 %v529, %v528
  %v533 = vpack.c.b16 %v531, %v530
  %v537 = vsel %vm37, %v523, 0
  %539 = vmatprep.subr.bf16.mxu0 0
  %540 = vmatpush1.bf16.msra.mxu0 %v532
  %541 = vmatprep.subr.bf16.mxu0 0
  %542 = vmatpush1.bf16.msra.mxu0 %v533
  %543 = vmatprep.subr.bf16.mxu0 0
  %544 = vmatpush1.bf16.msra.mxu0 0
  %545 = vmatprep.subr.bf16.mxu0 0
  %546 = vmatpush1.bf16.msra.mxu0 0
  %547 = vmatprep.subr.bf16.mxu0 0
  %548 = vmatpush1.bf16.msra.mxu0 0
  %549 = vmatprep.subr.bf16.mxu0 0
  %550 = vmatpush1.bf16.msra.mxu0 0
  %551 = vmatprep.subr.bf16.mxu0 0
  %552 = vmatpush1.bf16.msra.mxu0 0
  %553 = vmatprep.subr.bf16.mxu0 0
  %554 = vmatpush1.bf16.msra.mxu0 0
  %555 = vmatprep.subr.bf16.mxu0 0
  %556 = vmatpush1.bf16.msra.mxu0 0
  %557 = vmatprep.subr.bf16.mxu0 0
  %558 = vmatpush1.bf16.msra.mxu0 0
  %559 = vmatprep.subr.bf16.mxu0 0
  %560 = vmatpush1.bf16.msra.mxu0 0
  %561 = vmatprep.subr.bf16.mxu0 0
  %562 = vmatpush1.bf16.msra.mxu0 0
  %563 = vmatprep.subr.bf16.mxu0 0
  %564 = vmatpush1.bf16.msra.mxu0 0
  %565 = vmatprep.subr.bf16.mxu0 0
  %566 = vmatpush1.bf16.msra.mxu0 0
  %567 = vmatprep.subr.bf16.mxu0 0
  %568 = vmatpush1.bf16.msra.mxu0 0
  %569 = vmatprep.subr.bf16.mxu0 0
  %570 = vmatpush1.bf16.msra.mxu0 0
  %571 = vmatprep.mubr.bf16.mxu0 0
  %572 = vmatmul.mubr.bf16.gmra.mrb[0].mxu0 %v537
  %v573 = vpop.f32.mrb[0].mxu0
  %v574 = vadd.f32 0.0, %v573
  %v575 = vpop.f32.mrb[0].mxu0
  %v576 = vpop.f32.mrb[0].mxu0
  %v577 = vadd.f32 0.0, %v576
  %v578 = vpop.f32.mrb[0].mxu0
  %579 = vdwg.mxu0
  %v580 = vsub.f32 0.0, %v574
  %v581 = vsub.f32 0.0, %v577
  %v582 = vmul.f32 %v580, 1.442695
  %v583 = vpow.pop %v582
  %v584 = vmul.f32 %v581, 1.442695
  %v585 = vpow.pop %v584
  %v586 = vadd.f32 %v583, 1.0
  %v587 = vadd.f32 %v585, 1.0
  %v588 = vrcp.pop %v586
  %v589 = vrcp.pop %v587
  %v590 = vmul.f32 %v574, %v588
  %v591 = vmul.f32 %v577, %v589
  %v592 = vld [vmem:[%s2 + $0x8] sm:$0xf]
  %v593 = vld [vmem:[%s2 + $0xc] sm:$0xf]
  %v594 = vld [vmem:[%s2 + $0x10] sm:$0xf]
  %v595 = vld [vmem:[%s2 + $0x14] sm:$0xf]
  %v596 = vld [vmem:[%s2 + $0x18] sm:$0xf]
  %v597 = vld [vmem:[%s2 + $0x1c] sm:$0xf]
  %v598 = vld [vmem:[%s2 + $0x20] sm:$0xf]
  %v599 = vld [vmem:[%s2 + $0x24] sm:$0xf]
  %602 = vrot.lane.b32.xlu0 %v574, 64
  %v603 = vpop.permute.xlu0 %602
  %604 = vrot.lane.b32.xlu0 %v577, 64
  %v605 = vpop.permute.xlu0 %604
  %v608 = vmul.f32 %v590, %v603
  %v609 = vmul.f32 %v591, %v605
  %v610 = vpack.c.bf16 %v609, %v608
  %v619 = vunpack.c.l.b16 %v592
  %v620 = vunpack.c.l.b16 %v593
  %v621 = vunpack.c.l.b16 %v594
  %v622 = vunpack.c.l.b16 %v595
  %v623 = vunpack.c.l.b16 %v596
  %v624 = vunpack.c.l.b16 %v597
  %v625 = vunpack.c.l.b16 %v598
  %v626 = vunpack.c.l.b16 %v599
  %v627 = vpack.c.b16 %v620, %v619
  %v628 = vpack.c.b16 %v622, %v621
  %v629 = vpack.c.b16 %v624, %v623
  %v630 = vpack.c.b16 %v626, %v625
  %v636 = vsel %vm321, %v610, 0
  %638 = vmatprep.subr.bf16.mxu0 0
  %639 = vmatpush1.bf16.msra.mxu0 %v627
  %640 = vmatprep.subr.bf16.mxu0 0
  %641 = vmatpush1.bf16.msra.mxu0 %v628
  %642 = vmatprep.subr.bf16.mxu0 0
  %643 = vmatpush1.bf16.msra.mxu0 %v629
  %644 = vmatprep.subr.bf16.mxu0 0
  %645 = vmatpush1.bf16.msra.mxu0 %v630
  %646 = vmatprep.subr.bf16.mxu0 0
  %647 = vmatpush1.bf16.msra.mxu0 0
  %648 = vmatprep.subr.bf16.mxu0 0
  %649 = vmatpush1.bf16.msra.mxu0 0
  %650 = vmatprep.subr.bf16.mxu0 0
  %651 = vmatpush1.bf16.msra.mxu0 0
  %652 = vmatprep.subr.bf16.mxu0 0
  %653 = vmatpush1.bf16.msra.mxu0 0
  %654 = vmatprep.subr.bf16.mxu0 0
  %655 = vmatpush1.bf16.msra.mxu0 0
  %656 = vmatprep.subr.bf16.mxu0 0
  %657 = vmatpush1.bf16.msra.mxu0 0
  %658 = vmatprep.subr.bf16.mxu0 0
  %659 = vmatpush1.bf16.msra.mxu0 0
  %660 = vmatprep.subr.bf16.mxu0 0
  %661 = vmatpush1.bf16.msra.mxu0 0
  %662 = vmatprep.subr.bf16.mxu0 0
  %663 = vmatpush1.bf16.msra.mxu0 0
  %664 = vmatprep.subr.bf16.mxu0 0
  %665 = vmatpush1.bf16.msra.mxu0 0
  %666 = vmatprep.subr.bf16.mxu0 0
  %667 = vmatpush1.bf16.msra.mxu0 0
  %668 = vmatprep.subr.bf16.mxu0 0
  %669 = vmatpush1.bf16.msra.mxu0 0
  %670 = vmatprep.mubr.bf16.mxu0 0
  %671 = vmatmul.mubr.bf16.gmra.mrb[0].mxu0 %v636
  %v672 = vpop.f32.mrb[0].mxu0
  %v673 = vadd.f32 0.0, %v672
  %v674 = vpop.f32.mrb[0].mxu0
  %v675 = vpop.f32.mrb[0].mxu0
  %v676 = vadd.f32 0.0, %v675
  %v677 = vpop.f32.mrb[0].mxu0
  %678 = vdwg.mxu0
  %v679 = vadd.f32 %v488, %v673
  %v680 = vadd.f32 %v489, %v676
  %683 = vrot.lane.b32.xlu0 %v173, 16
  %v684 = vpop.permute.xlu0 %683
  %685 = vrot.lane.b32.xlu0 %v174, 16
  %v686 = vpop.permute.xlu0 %685
  %691 = vrot.lane.b32.xlu0 %v121, 16
  %v692 = vpop.permute.xlu0 %691
  %693 = vrot.lane.b32.xlu0 %v124, 16
  %v694 = vpop.permute.xlu0 %693
  %v697 = vsel %vm37, %v679, %v684
  %v698 = vsel %vm37, %v680, %v686
  %vm699 = vcmask 392192
  %v700 = vsel %vm699, %v697, %v692
  %v701 = vsel %vm699, %v698, %v694
  %v702 = vsel %vm321, %v700, 0.0
  %v703 = vsel %vm321, %v701, 0.0
  %704 = vst [vmem:[%s5] sm:$0xff] %v702
  %705 = vst [vmem:[%s5 + $0x8] sm:$0xff] %v703
  // Predicated region
  $region22: #{_transformer_block_impl.1} parent=0 // pred_check
    _
  $region23: #{_transformer_block_impl.1} parent=0 // pred_check_branch
    %707 = sbr.rel (0) target = $region25
  $region24: #{_transformer_block_impl.1} parent=0 // pred_region
    _
  $region25: #{_transformer_block_impl.1} parent=0 // pred_fallthru
    _
  // Predicated region
  $region26: #{_transformer_block_impl.1} parent=0 // pred_check
    _
  $region27: #{_transformer_block_impl.1} parent=0 // pred_check_branch
    %709 = sbr.rel (0) target = $region29
  $region28: #{_transformer_block_impl.1} parent=0 // pred_region
    _
  $region29: #{_transformer_block_impl.1} parent=0 // pred_fallthru
    _

</llo_original>
